<compile_context>
chip_gen: v6e
topology: v6e:2x2x1
jax: 0.10.0
libtpu: 0.0.40
codegen_flags: <defaults>
</compile_context>

<pallas_src>
import functools

import jax
import jax.numpy as jnp
from jax import lax
from jax.experimental import pallas as pl
from jax.experimental.pallas import tpu as pltpu

EPSILON = 1e-9


def _pick_tm(n, budget_bytes=16 << 20):
    """Largest row-block size that divides N and keeps the double-buffered (TM, N)
    dist tile under ~16 MiB (portable to v7x's smaller VMEM)."""
    for tm in (1024, 512, 256, 128, 64, 32, 16, 8):
        if n % tm == 0 and 2 * tm * n * 4 <= budget_bytes:
            return tm
    return n


# ----------------------- kernel 1: pairwise squared distances (relu'd) ----------------------- #

def _cdist_relu_kernel(x_ref, x2row_ref, d_ref, *, tm):
    b = pl.program_id(0)
    n = x_ref.shape[0]
    if tm == n:
        xb = x_ref[...]
    else:
        start = pl.multiple_of(b * tm, tm)
        xb = x_ref[pl.ds(start, tm), :]
    # Row-block Gram on the MXU: xb @ x^T  -> (TM, N), lane-dense along N.
    gram = lax.dot_general(xb, x_ref[...], (((1,), (1,)), ((), ())),
                           preferred_element_type=jnp.float32)
    # Row norms computed directly (no eye-masked N x N trick).
    x2b = jnp.sum(xb * xb, axis=1, keepdims=True)                        # (TM, 1)
    d = x2b - 2.0 * gram + x2row_ref[...]                                # + (1, N)
    d_ref[...] = jnp.maximum(d, 0.0)                                     # relu (DDC kernel_from_distance_matrix)


def _pairwise_sq_dists(x):
    x = x.astype(jnp.float32)
    n, h = x.shape
    tm = _pick_tm(n)
    x2row = jnp.sum(x * x, axis=1)[None, :]                              # (1, N), tiny
    return pl.pallas_call(
        functools.partial(_cdist_relu_kernel, tm=tm),
        grid=(n // tm,),
        out_shape=jax.ShapeDtypeStruct((n, n), jnp.float32),
        in_specs=[pl.BlockSpec((n, h), lambda b: (0, 0)),                # x resident
                  pl.BlockSpec((1, n), lambda b: (0, 0))],               # row norms resident
        out_specs=pl.BlockSpec((tm, n), lambda b: (b, 0)),
        compiler_params=pltpu.CompilerParams(dimension_semantics=("parallel",)),
    )(x, x2row)


# ----------------------- shared finalize: Cauchy-Schwarz divergence from nom ----------------------- #

def _d_cs_from_nom(nom, n_clusters):
    c = nom.shape[0]
    ii = lax.broadcasted_iota(jnp.int32, (c, c), 0)
    jj = lax.broadcasted_iota(jnp.int32, (c, c), 1)
    eye = (ii == jj).astype(nom.dtype)
    sq = nom * eye
    diag_col = jnp.sum(sq, axis=1, keepdims=True)                        # diag(nom) (C, 1)
    diag_row = jnp.sum(sq, axis=0, keepdims=True)                        # diag(nom) (1, C)
    dnom = diag_col * diag_row
    nom_c = jnp.where(nom < EPSILON, EPSILON, nom)
    dnom_c = jnp.where(dnom < EPSILON ** 2, EPSILON ** 2, dnom)
    frac = nom_c * lax.rsqrt(dnom_c)                                     # EUP rsqrt, no divide
    # frac is symmetric with unit diagonal -> triu(k=1) sum = (sum(frac) - C) / 2
    return (2.0 / (n_clusters * (n_clusters - 1))) * 0.5 * (jnp.sum(frac) - c)


# ----------------------- kernel 2: fused Gaussian kernel + ddc_1 / ddc_2 / ddc_3 ----------------------- #

def _fused_ddc_kernel(s_ref, dist_ref, a_ref, o1_ref, o2_ref, o3_ref,
                      atk1_sc, atk3_sc, m_sc, *, tm, n_clusters):
    b = pl.program_id(0)
    nb = pl.num_programs(0)
    n = a_ref.shape[0]

    @pl.when(b == 0)
    def _init():
        atk1_sc[...] = jnp.zeros_like(atk1_sc)
        atk3_sc[...] = jnp.zeros_like(atk3_sc)
        a = a_ref[...]
        a2 = jnp.sum(a * a, axis=1, keepdims=True)
        # cdist(A, eye_C) = ||a_i||^2 - 2 a_ic + 1  (no relu in DDC3)
        m_sc[...] = jnp.exp(-(a2 - 2.0 * a + 1.0))

    # K rows for this block live only in VMEM (never written to HBM).
    s = s_ref[0, 0]                                                      # -1 / (2 sigma^2)
    kb = jnp.exp(dist_ref[...] * s)                                      # (TM, N)

    if tm == n:
        ab = a_ref[...]
        mb = m_sc[...]
    else:
        start = pl.multiple_of(b * tm, tm)
        ab = a_ref[pl.ds(start, tm), :]                                  # (TM, C)
        mb = m_sc[pl.ds(start, tm), :]                                   # (TM, C)

    # Lane-dense (C, N) partial products: A^T K and M^T K.
    atk1_sc[...] += lax.dot_general(ab, kb, (((0,), (0,)), ((), ())),
                                    preferred_element_type=jnp.float32)
    atk3_sc[...] += lax.dot_general(mb, kb, (((0,), (0,)), ((), ())),
                                    preferred_element_type=jnp.float32)

    @pl.when(b == nb - 1)
    def _finalize():
        a = a_ref[...]
        m = m_sc[...]
        nom1 = jnp.dot(atk1_sc[...], a, preferred_element_type=jnp.float32)   # (C, C)
        nom3 = jnp.dot(atk3_sc[...], m, preferred_element_type=jnp.float32)   # (C, C)
        o1_ref[...] = _d_cs_from_nom(nom1, n_clusters).reshape(1, 1)
        o3_ref[...] = _d_cs_from_nom(nom3, n_clusters).reshape(1, 1)
        # ddc_2 closed form: triu(A A^T, k=1).sum() == (||sum_i a_i||^2 - sum_i ||a_i||^2) / 2
        colsum = jnp.sum(a, axis=0, keepdims=True)                       # (1, C)
        total = jnp.sum(colsum * colsum)
        trace = jnp.sum(a * a)
        o2_ref[...] = ((2.0 / (n * (n - 1))) * 0.5 * (total - trace)).reshape(1, 1)


def _fused_ddc_losses(hidden, output, rel_sigma, n_clusters):
    output = output.astype(jnp.float32)
    n, c = output.shape

    dist = _pairwise_sq_dists(hidden)

    # torch.median returns the *lower* median for even element counts -> sort & index.
    # TODO(synk): the O(N^2 log N^2) sort is the asymptotic bottleneck for large N; an
    # in-kernel histogram/bisection median would avoid it but changes exact median semantics.
    med = jnp.sort(dist.reshape(-1))[(dist.size - 1) // 2]
    sigma2 = jnp.maximum(rel_sigma * med, EPSILON)
    s = (-0.5 / sigma2).astype(jnp.float32).reshape(1, 1)                # K = exp(dist * s)

    tm = _pick_tm(n)
    o1, o2, o3 = pl.pallas_call(
        functools.partial(_fused_ddc_kernel, tm=tm, n_clusters=n_clusters),
        grid=(n // tm,),
        out_shape=(jax.ShapeDtypeStruct((1, 1), jnp.float32),
                   jax.ShapeDtypeStruct((1, 1), jnp.float32),
                   jax.ShapeDtypeStruct((1, 1), jnp.float32)),
        in_specs=[pl.BlockSpec(memory_space=pltpu.SMEM),                 # scalar s
                  pl.BlockSpec((tm, n), lambda b: (b, 0)),               # dist row block
                  pl.BlockSpec((n, c), lambda b: (0, 0))],               # output resident
        out_specs=(pl.BlockSpec((1, 1), lambda b: (0, 0)),
                   pl.BlockSpec((1, 1), lambda b: (0, 0)),
                   pl.BlockSpec((1, 1), lambda b: (0, 0))),
        scratch_shapes=[pltpu.VMEM((c, n), jnp.float32),                 # A^T K accumulator
                        pltpu.VMEM((c, n), jnp.float32),                 # M^T K accumulator
                        pltpu.VMEM((n, c), jnp.float32)],                # M = exp(-cdist(A, I))
        compiler_params=pltpu.CompilerParams(dimension_semantics=("arbitrary",)),
    )(s, dist, output)
    return {'ddc_1': o1[0, 0], 'ddc_2': o2[0, 0], 'ddc_3': o3[0, 0]}


# ----------------------- standalone ddc_2 (only used when no kernel matrix is required) ----------------------- #

def _ddc2_only_kernel(a_ref, o_ref):
    a = a_ref[...]
    n = a.shape[0]
    colsum = jnp.sum(a, axis=0, keepdims=True)
    total = jnp.sum(colsum * colsum)
    trace = jnp.sum(a * a)
    o_ref[...] = ((2.0 / (n * (n - 1))) * 0.5 * (total - trace)).reshape(1, 1)


def ddc2(output):
    output = output.astype(jnp.float32)
    n, c = output.shape
    return pl.pallas_call(
        _ddc2_only_kernel,
        out_shape=jax.ShapeDtypeStruct((1, 1), jnp.float32),
        in_specs=[pl.BlockSpec((n, c), lambda: (0, 0))],
        out_specs=pl.BlockSpec((1, 1), lambda: (0, 0)),
    )(output)[0, 0]


# ----------------------- Loss module (mirrors the PyTorch class) ----------------------- #

class Loss:
    # TODO(synk): only the DDC terms (ddc_1 / ddc_2 / ddc_3) are ported; the contrast /
    # reconstruct / uco terms require extra `net` attributes not used by the default config.
    def __init__(self, cfg):
        self.cfg = cfg
        self.names = cfg.funcs.split('|')
        self.weights = cfg.weights if cfg.weights is not None else len(self.names) * [1]
        unsupported = [nm for nm in self.names if nm not in ('ddc_1', 'ddc_2', 'ddc_3')]
        if unsupported:
            raise NotImplementedError(f"loss terms {unsupported} not ported")

    def __call__(self, net, ignore_in_total=tuple()):
        need_kernel = any(nm in ('ddc_1', 'ddc_3') for nm in self.names)
        fused = None
        if need_kernel:
            fused = _fused_ddc_losses(net['hidden'], net['output'],
                                      self.cfg.rel_sigma, self.cfg.n_clusters)
        loss_values = {}
        for name, weight in zip(self.names, self.weights):
            if fused is not None:
                value = fused[name]
            elif name == 'ddc_2':
                value = ddc2(net['output'])
            else:  # pragma: no cover
                raise NotImplementedError(name)
            loss_values[name] = weight * value
        loss_values['tot'] = sum(v for k, v in loss_values.items() if k not in ignore_in_total)
        return loss_values


# ----------------------- pure-JAX reference (correctness check) ----------------------- #

def _ref_loss(hidden, output, cfg):
    def cdist(X, Y):
        return (jnp.sum(X ** 2, axis=1, keepdims=True)
                - 2.0 * X @ Y.T
                + jnp.sum(Y ** 2, axis=1, keepdims=True).T)

    dist = jnp.maximum(cdist(hidden, hidden), 0.0)
    med = jnp.sort(dist.reshape(-1))[(dist.size - 1) // 2]
    sigma2 = jnp.maximum(cfg.rel_sigma * med, EPSILON)
    K = jnp.exp(-dist / (2.0 * sigma2))

    def d_cs(A, K, nc):
        nom = A.T @ K @ A
        diag = jnp.diagonal(nom)
        dnom = diag[:, None] * diag[None, :]
        nom = jnp.where(nom < EPSILON, EPSILON, nom)
        dnom = jnp.where(dnom < EPSILON ** 2, EPSILON ** 2, dnom)
        return 2.0 / (nc * (nc - 1)) * jnp.sum(jnp.triu(nom / jnp.sqrt(dnom), k=1))

    n = output.shape[0]
    l1 = d_cs(output, K, cfg.n_clusters)
    l2 = 2.0 / (n * (n - 1)) * jnp.sum(jnp.triu(output @ output.T, k=1))
    m = jnp.exp(-cdist(output, jnp.eye(cfg.n_clusters, dtype=output.dtype)))
    l3 = d_cs(m, K, cfg.n_clusters)
    return {'ddc_1': l1, 'ddc_2': l2, 'ddc_3': l3, 'tot': l1 + l2 + l3}


if __name__ == "__main__":
    class Cfg:
        funcs = 'ddc_1|ddc_2|ddc_3'
        weights = None
        n_clusters = 10
        rel_sigma = 0.15

    cfg = Cfg()
    n, hidden_dim = 64, 32

    key = jax.random.PRNGKey(0)
    k1, k2 = jax.random.split(key)
    hidden = jax.random.normal(k1, (n, hidden_dim), dtype=jnp.float32)        # net.hidden
    logits = jax.random.normal(k2, (n, cfg.n_clusters), dtype=jnp.float32)
    output = jax.nn.softmax(logits, axis=1)                                   # net.output (soft assignments)

    net = {'hidden': hidden, 'output': output}

    loss = Loss(cfg)
    vals = loss(net)
    vals = {k: jax.block_until_ready(v) for k, v in vals.items()}

    ref = _ref_loss(hidden, output, cfg)
    for k in ('ddc_1', 'ddc_2', 'ddc_3', 'tot'):
        got, want = float(vals[k]), float(ref[k])
        assert abs(got - want) < 1e-3 * max(1.0, abs(want)), (k, got, want)

    print("KERNEL_OK")
</pallas_src>

<mosaic_0001>
module attributes {stable_mosaic.version = 11 : i64} {
  func.func @_cdist_relu_kernel(%arg0: i32, %arg1: memref<64x32xf32, #tpu.memory_space<vmem>>, %arg2: memref<1x64xf32, #tpu.memory_space<vmem>>, %arg3: memref<64x64xf32, #tpu.memory_space<vmem>>) attributes {dimension_semantics = [#tpu.dimension_semantics<parallel>], iteration_bounds = array<i64: 1>, scalar_prefetch = 0 : i64, scratch_operands = 0 : i64, tpu.core_type = #tpu.core_type<tc>, window_params = [{pipeline_mode = #tpu.pipeline_mode<synchronous>, transform_indices = @transform_0, window_bounds = array<i64: 64, 32>}, {pipeline_mode = #tpu.pipeline_mode<synchronous>, transform_indices = @transform_1, window_bounds = array<i64: 1, 64>}, {transform_indices = @transform_2, window_bounds = array<i64: 64, 64>}]} {
    %c0 = arith.constant 0 : index
    %c0_0 = arith.constant 0 : index
    %0 = vector.load %arg1[%c0, %c0_0] : memref<64x32xf32, #tpu.memory_space<vmem>>, vector<64x32xf32>
    %c0_1 = arith.constant 0 : index
    %c0_2 = arith.constant 0 : index
    %1 = vector.load %arg1[%c0_1, %c0_2] : memref<64x32xf32, #tpu.memory_space<vmem>>, vector<64x32xf32>
    %cst = arith.constant dense<0.000000e+00> : vector<64x64xf32>
    %2 = tpu.matmul %0, %1, %cst {dimension_numbers = #tpu.dot_dimension_numbers<[1], [1], [0], [0], [0, 0, 1, 0], [], []>} : vector<64x32xf32>, vector<64x32xf32>, vector<64x64xf32> -> vector<64x64xf32>
    %3 = arith.mulf %0, %0 : vector<64x32xf32>
    %cst_3 = arith.constant dense<0.000000e+00> : vector<64xf32>
    %4 = vector.multi_reduction <add>, %3, %cst_3 [1] : vector<64x32xf32> to vector<64xf32>
    %5 = vector.shape_cast %4 : vector<64xf32> to vector<64x1xf32>
    %cst_4 = arith.constant 2.000000e+00 : f32
    %6 = vector.broadcast %cst_4 : f32 to vector<64x64xf32>
    %7 = arith.mulf %6, %2 : vector<64x64xf32>
    %8 = vector.broadcast %5 : vector<64x1xf32> to vector<64x64xf32>
    %9 = arith.subf %8, %7 : vector<64x64xf32>
    %c0_5 = arith.constant 0 : index
    %c0_6 = arith.constant 0 : index
    %10 = vector.load %arg2[%c0_5, %c0_6] : memref<1x64xf32, #tpu.memory_space<vmem>>, vector<1x64xf32>
    %11 = vector.broadcast %10 : vector<1x64xf32> to vector<64x64xf32>
    %12 = arith.addf %9, %11 : vector<64x64xf32>
    %cst_7 = arith.constant 0.000000e+00 : f32
    %13 = vector.broadcast %cst_7 : f32 to vector<64x64xf32>
    %14 = arith.maximumf %12, %13 : vector<64x64xf32>
    %c0_8 = arith.constant 0 : index
    %c0_9 = arith.constant 0 : index
    %15 = vector.load %arg3[%c0_8, %c0_9] : memref<64x64xf32, #tpu.memory_space<vmem>>, vector<64x64xf32>
    tpu.vector_store %arg3[%c0_8, %c0_9], %14 {strides = array<i32>} : memref<64x64xf32, #tpu.memory_space<vmem>>, vector<64x64xf32>,
    return
  }
  func.func @transform_0(%arg0: i32) -> (i32, i32) {
    %c0_i32 = arith.constant 0 : i32
    %c0_i32_0 = arith.constant 0 : i32
    %c0_i32_1 = arith.constant 0 : i32
    return %c0_i32, %c0_i32_0 : i32, i32
  }
  func.func @transform_1(%arg0: i32) -> (i32, i32) {
    %c0_i32 = arith.constant 0 : i32
    %c0_i32_0 = arith.constant 0 : i32
    %c0_i32_1 = arith.constant 0 : i32
    return %c0_i32, %c0_i32_0 : i32, i32
  }
  func.func @transform_2(%arg0: i32) -> (i32, i32) {
    %c0_i32 = arith.constant 0 : i32
    %c0_i32_0 = arith.constant 0 : i32
    return %arg0, %c0_i32 : i32, i32
  }
}

</mosaic_0001>

<llo_original>
// kernel: tpu_custom_call.1
$region0: #{tpu_custom_call.1}
  #allocation0 [shape = 'u32[]', space=smem, size = 0x4, offset = 0x4, fixed_abs, tag = 'smem constant byte address 0x4 - core index']
  #allocation1 [shape = 'u32[144,128]{1,0:T(1,128)}', space=vmem, size = 0x12000, scoped, tag = 'internal scratch']
  %s0 = inlined_call_operand.vmem [shape: f32[64,32], index: 0, kind: input, shape index: {}]
  %s1 = inlined_call_operand.vmem [shape: f32[1,64], index: 1, kind: input, shape index: {}]
  %s2 = inlined_call_operand.hbm [shape: f32[64,64], index: 2, kind: output, shape index: {}]
  %s3 = sld [smem:[#allocation0]]
  $region18: #{tpu_custom_call.1} parent=0
    _
  %s5 = ssub.s32 1, %s3
  %s6 = scalar_select 0, %s5, %s3
  $region1: #{tpu_custom_call.1} parent=0
    #allocation2 [shape = 'u8[32768]{0}', space=vmem, size = 0x8000, scoped, tag = 'output window, operand 0, single buffered']
    #allocation3 [shape = 's32[1]{0}', space=sflag, size = 0x4, scoped, tag = 'scoped memory for tpu_custom_call.1']
    %7 = vsyncpa [#allocation3], 0
    // Predicated region
    $region2: #{tpu_custom_call.1} parent=1 // pred_check
      _
    $region3: #{tpu_custom_call.1} parent=1 // pred_check_branch
      %9 = sbr.rel (0) target = $region5
    $region4: #{tpu_custom_call.1} parent=1 // pred_region
      _
    $region5: #{tpu_custom_call.1} parent=1 // pred_fallthru
      _
    // Predicated region
    $region6: #{tpu_custom_call.1} parent=1 // pred_check
      _
    $region7: #{tpu_custom_call.1} parent=1 // pred_check_branch
      %11 = sbr.rel (0) target = $region9
    $region8: #{tpu_custom_call.1} parent=1 // pred_region
      _
    $region9: #{tpu_custom_call.1} parent=1 // pred_fallthru
      _
    %v12 = vld [vmem:[%s0] sm:$0xff]
    %v13 = vld [vmem:[%s0 + $0x8] sm:$0xff]
    %v14 = vld [vmem:[%s0 + $0x10] sm:$0xff]
    %v15 = vld [vmem:[%s0 + $0x18] sm:$0xff]
    %v16 = vld [vmem:[%s0 + $0x20] sm:$0xff]
    %v17 = vld [vmem:[%s0 + $0x28] sm:$0xff]
    %v18 = vld [vmem:[%s0 + $0x30] sm:$0xff]
    %v19 = vld [vmem:[%s0 + $0x38] sm:$0xff]
    %vm20 = vcmask 261120
    %v22 = vsel %vm20, %v12, 0
    %v25 = vsel %vm20, %v13, 0
    %v28 = vsel %vm20, %v14, 0
    %v31 = vsel %vm20, %v15, 0
    %v34 = vsel %vm20, %v16, 0
    %v37 = vsel %vm20, %v17, 0
    %v40 = vsel %vm20, %v18, 0
    %v43 = vsel %vm20, %v19, 0
    %45 = vmatprep.subr.mxu0 0.0
    %46 = vmatpush1.xpose.msra.mxu0 0.0
    %47 = vmatprep.subr.mxu0 0.0
    %48 = vmatpush1.xpose.msra.mxu0 0.0
    %49 = vmatprep.subr.mxu0 0.0
    %50 = vmatpush1.xpose.msra.mxu0 0.0
    %51 = vmatprep.subr.mxu0 0.0
    %52 = vmatpush1.xpose.msra.mxu0 0.0
    %53 = vmatprep.subr.mxu0 0.0
    %54 = vmatpush1.xpose.msra.mxu0 0.0
    %55 = vmatprep.subr.mxu0 0.0
    %56 = vmatpush1.xpose.msra.mxu0 0.0
    %57 = vmatprep.subr.mxu0 0.0
    %58 = vmatpush1.xpose.msra.mxu0 0.0
    %59 = vmatprep.subr.mxu0 0.0
    %60 = vmatpush1.xpose.msra.mxu0 0.0
    %61 = vmatprep.subr.mxu0 0.0
    %62 = vmatpush1.xpose.msra.mxu0 %v43
    %63 = vmatprep.subr.mxu0 0.0
    %64 = vmatpush1.xpose.msra.mxu0 %v40
    %65 = vmatprep.subr.mxu0 0.0
    %66 = vmatpush1.xpose.msra.mxu0 %v37
    %67 = vmatprep.subr.mxu0 0.0
    %68 = vmatpush1.xpose.msra.mxu0 %v34
    %69 = vmatprep.subr.mxu0 0.0
    %70 = vmatpush1.xpose.msra.mxu0 %v31
    %71 = vmatprep.subr.mxu0 0.0
    %72 = vmatpush1.xpose.msra.mxu0 %v28
    %73 = vmatprep.subr.mxu0 0.0
    %74 = vmatpush1.xpose.msra.mxu0 %v25
    %75 = vmatprep.subr.mxu0 0.0
    %76 = vmatpush1.xpose.msra.mxu0 %v22
    %77 = vmatprep.subr.mxu0 0.0
    %78 = vmatpush2.xpose.msra.mxu0 0.0
    %79 = vmatprep.subr.mxu0 0.0
    %80 = vmatpush2.xpose.msra.mxu0 0.0
    %81 = vmatprep.subr.mxu0 0.0
    %82 = vmatpush2.xpose.msra.mxu0 0.0
    %83 = vmatprep.subr.mxu0 0.0
    %84 = vmatpush2.xpose.msra.mxu0 0.0
    %85 = vmatprep.subr.mxu0 0.0
    %86 = vmatpush2.xpose.msra.mxu0 0.0
    %87 = vmatprep.subr.mxu0 0.0
    %88 = vmatpush2.xpose.msra.mxu0 0.0
    %89 = vmatprep.subr.mxu0 0.0
    %90 = vmatpush2.xpose.msra.mxu0 0.0
    %91 = vmatprep.subr.mxu0 0.0
    %92 = vmatpush2.xpose.msra.mxu0 0.0
    %93 = vmatprep.subr.mxu0 0.0
    %94 = vmatpush2.xpose.msra.mxu0 0.0
    %95 = vmatprep.subr.mxu0 0.0
    %96 = vmatpush2.xpose.msra.mxu0 0.0
    %97 = vmatprep.subr.mxu0 0.0
    %98 = vmatpush2.xpose.msra.mxu0 0.0
    %99 = vmatprep.subr.mxu0 0.0
    %100 = vmatpush2.xpose.msra.mxu0 0.0
    %101 = vmatprep.subr.mxu0 0.0
    %102 = vmatpush2.xpose.msra.mxu0 0.0
    %103 = vmatprep.subr.mxu0 0.0
    %104 = vmatpush2.xpose.msra.mxu0 0.0
    %105 = vmatprep.subr.mxu0 0.0
    %106 = vmatpush2.xpose.msra.mxu0 0.0
    %107 = vmatprep.subr.mxu0 0.0
    %108 = vmatpush2.xpose.msra.mxu0 0.0
    %109 = vmatprep.mubr.f32.mxu0 0.0
    %110 = vmatmul.mubr.f32.gmra.mxu0 %v22
    %v111 = vpop.f32.mrf.mxu0
    %v112 = vadd.f32 0.0, %v111
    %v113 = vpop.f32.mrf.mxu0
    %114 = vmatprep.mubr.f32.mxu0 0.0
    %115 = vmatmul.mubr.f32.gmra.mxu0 %v25
    %v116 = vpop.f32.mrf.mxu0
    %v117 = vadd.f32 0.0, %v116
    %v118 = vpop.f32.mrf.mxu0
    %119 = vmatprep.mubr.f32.mxu0 0.0
    %120 = vmatmul.mubr.f32.gmra.mxu0 %v28
    %v121 = vpop.f32.mrf.mxu0
    %v122 = vadd.f32 0.0, %v121
    %v123 = vpop.f32.mrf.mxu0
    %124 = vmatprep.mubr.f32.mxu0 0.0
    %125 = vmatmul.mubr.f32.gmra.mxu0 %v31
    %v126 = vpop.f32.mrf.mxu0
    %v127 = vadd.f32 0.0, %v126
    %v128 = vpop.f32.mrf.mxu0
    %129 = vmatprep.mubr.f32.mxu0 0.0
    %130 = vmatmul.mubr.f32.gmra.mxu0 %v34
    %v131 = vpop.f32.mrf.mxu0
    %v132 = vadd.f32 0.0, %v131
    %v133 = vpop.f32.mrf.mxu0
    %134 = vmatprep.mubr.f32.mxu0 0.0
    %135 = vmatmul.mubr.f32.gmra.mxu0 %v37
    %v136 = vpop.f32.mrf.mxu0
    %v137 = vadd.f32 0.0, %v136
    %v138 = vpop.f32.mrf.mxu0
    %139 = vmatprep.mubr.f32.mxu0 0.0
    %140 = vmatmul.mubr.f32.gmra.mxu0 %v40
    %v141 = vpop.f32.mrf.mxu0
    %v142 = vadd.f32 0.0, %v141
    %v143 = vpop.f32.mrf.mxu0
    %144 = vmatprep.mubr.f32.mxu0 0.0
    %145 = vmatmul.mubr.f32.gmra.mxu0 %v43
    %v146 = vpop.f32.mrf.mxu0
    %v147 = vadd.f32 0.0, %v146
    %v148 = vpop.f32.mrf.mxu0
    %149 = vdwg.mxu0
    %v150 = vmul.f32 %v12, %v12
    %v151 = vmul.f32 %v13, %v13
    %v152 = vmul.f32 %v14, %v14
    %v153 = vmul.f32 %v15, %v15
    %v154 = vmul.f32 %v16, %v16
    %v155 = vmul.f32 %v17, %v17
    %v156 = vmul.f32 %v18, %v18
    %v157 = vmul.f32 %v19, %v19
    %v158 = vsel %vm20, %v150, 0.0
    %159 = vadd.xlane.f32.xlu0 %v158
    %v160 = vpop.xlane.xlu0 %159
    %v161 = vsel %vm20, %v151, 0.0
    %162 = vadd.xlane.f32.xlu0 %v161
    %v163 = vpop.xlane.xlu0 %162
    %v164 = vsel %vm20, %v152, 0.0
    %165 = vadd.xlane.f32.xlu0 %v164
    %v166 = vpop.xlane.xlu0 %165
    %v167 = vsel %vm20, %v153, 0.0
    %168 = vadd.xlane.f32.xlu0 %v167
    %v169 = vpop.xlane.xlu0 %168
    %v170 = vsel %vm20, %v154, 0.0
    %171 = vadd.xlane.f32.xlu0 %v170
    %v172 = vpop.xlane.xlu0 %171
    %v173 = vsel %vm20, %v155, 0.0
    %174 = vadd.xlane.f32.xlu0 %v173
    %v175 = vpop.xlane.xlu0 %174
    %v176 = vsel %vm20, %v156, 0.0
    %177 = vadd.xlane.f32.xlu0 %v176
    %v178 = vpop.xlane.xlu0 %177
    %v179 = vsel %vm20, %v157, 0.0
    %180 = vadd.xlane.f32.xlu0 %v179
    %v181 = vpop.xlane.xlu0 %180
    %v182 = vmul.f32 %v112, 2.0
    %v183 = vmul.f32 %v117, 2.0
    %v184 = vmul.f32 %v122, 2.0
    %v185 = vmul.f32 %v127, 2.0
    %v186 = vmul.f32 %v132, 2.0
    %v187 = vmul.f32 %v137, 2.0
    %v188 = vmul.f32 %v142, 2.0
    %v189 = vmul.f32 %v147, 2.0
    %v190 = vsub.f32 %v160, %v182
    %v191 = vsub.f32 %v163, %v183
    %v192 = vsub.f32 %v166, %v184
    %v193 = vsub.f32 %v169, %v185
    %v194 = vsub.f32 %v172, %v186
    %v195 = vsub.f32 %v175, %v187
    %v196 = vsub.f32 %v178, %v188
    %v197 = vsub.f32 %v181, %v189
    %v198 = vld [vmem:[%s1] sm:$0x1]
    %v200 = vlaneseq
    %v201 = vshrl.u32 %v200, 7
    %v202 = vsub.s32 0, %v201
    %v203 = vrot.slane %v198, %v202
    %v205 = vadd.f32 %v190, %v203
    %v206 = vadd.f32 %v191, %v203
    %v207 = vadd.f32 %v192, %v203
    %v208 = vadd.f32 %v193, %v203
    %v209 = vadd.f32 %v194, %v203
    %v210 = vadd.f32 %v195, %v203
    %v211 = vadd.f32 %v196, %v203
    %v212 = vadd.f32 %v197, %v203
    %v213 = vmax.f32 %v205, 0.0
    %v214 = vmax.f32 %v206, 0.0
    %v215 = vmax.f32 %v207, 0.0
    %v216 = vmax.f32 %v208, 0.0
    %v217 = vmax.f32 %v209, 0.0
    %v218 = vmax.f32 %v210, 0.0
    %v219 = vmax.f32 %v211, 0.0
    %v220 = vmax.f32 %v212, 0.0
    %vm221 = vcmask 523264
    %222 = vst.msk [vmem:[#allocation2] sm:$0xff] %vm221, %v213
    %223 = vst.msk [vmem:[#allocation2 + $0x8] sm:$0xff] %vm221, %v214
    %224 = vst.msk [vmem:[#allocation2 + $0x10] sm:$0xff] %vm221, %v215
    %225 = vst.msk [vmem:[#allocation2 + $0x18] sm:$0xff] %vm221, %v216
    %226 = vst.msk [vmem:[#allocation2 + $0x20] sm:$0xff] %vm221, %v217
    %227 = vst.msk [vmem:[#allocation2 + $0x28] sm:$0xff] %vm221, %v218
    %228 = vst.msk [vmem:[#allocation2 + $0x30] sm:$0xff] %vm221, %v219
    %229 = vst.msk [vmem:[#allocation2 + $0x38] sm:$0xff] %vm221, %v220
    // Predicated region
    $region10: #{tpu_custom_call.1} parent=1 // pred_check
      _
    $region11: #{tpu_custom_call.1} parent=1 // pred_check_branch
      %231 = sbr.rel (0) target = $region13
    $region12: #{tpu_custom_call.1} parent=1 // pred_region
      %s233 = ssub.s32 1024, 1024
      %234 = vsyncadd [#allocation3], %s233
      %s235 = sshll.u32 [#allocation2], 4
      %s236 = int_to_ptr.vmem [resolvable:$true] %s235
      %241 = dma.vmem_to_hbm [thread:$0]  %s236, 1024, %s2, [#allocation3], 128, 128, 8
    $region13: #{tpu_custom_call.1} parent=1 // pred_fallthru
      _
    // Predicated region
    $region14: #{tpu_custom_call.1} parent=1 // pred_check
      _
    $region15: #{tpu_custom_call.1} parent=1 // pred_check_branch
      %243 = sbr.rel (0) target = $region17
    $region16: #{tpu_custom_call.1} parent=1 // pred_region
      %244 = dma.done [#allocation3], 1024
    $region17: #{tpu_custom_call.1} parent=1 // pred_fallthru
      _
    %245 = vsyncpa [#allocation3], 1

</llo_original>
